<compile_context>
chip_gen: v6e
topology: v6e:2x2x1
jax: 0.10.0
libtpu: 0.0.40
codegen_flags: <defaults>
</compile_context>

<pallas_src>
import functools

import jax
import jax.numpy as jnp
import numpy as np
from jax.experimental import pallas as pl
from jax.experimental.pallas import tpu as pltpu


def _round_up(a, b):
    return ((a + b - 1) // b) * b


def _device_kind():
    try:
        return jax.devices()[0].device_kind.lower()
    except Exception:
        return ""


def _default_core_split():
    # 2 TensorCores per chip only on v7x; on single-TC v5e/v6e a "parallel"
    # core axis is just a serial outer loop + extra padding.
    return 2 if "v7" in _device_kind() else 1


def _default_eup_dtype():
    # bf16 EUP (tanh/exp) on v6e/v7x roughly doubles transcendental throughput;
    # v5e (and unknown chips) keep f32.
    kind = _device_kind()
    return jnp.bfloat16 if ("v6" in kind or "v7" in kind) else jnp.float32


def _vmem_cap_bytes():
    # v7x: 64 MiB VMEM per TC -> leave headroom; v5e/v6e: 128 MiB physical.
    return (48 << 20) if "v7" in _device_kind() else (96 << 20)


# --------------------------------------------------------------------------
# Kernel
# --------------------------------------------------------------------------
def club_sample_kernel(x_ref, y_ref, ys_ref, w1_ref, b1_ref, w2_ref, b2_ref,
                       out_ref, acc_ref, *, eup_dtype):
    i = pl.program_id(1)                      # batch-tile (reduction) axis

    @pl.when(i == 0)
    def _init():
        acc_ref[...] = jnp.zeros_like(acc_ref)

    # Fused 2-layer MLP: one matmul per layer feeds both heads (mu | logvar).
    x = x_ref[...]                                              # (tn, x_dim)
    h = jnp.dot(x, w1_ref[...],
                preferred_element_type=jnp.float32) + b1_ref[...]
    h = jnp.maximum(h, 0.0).astype(w2_ref.dtype)                # ReLU
    o2 = jnp.dot(h, w2_ref[...],
                 preferred_element_type=jnp.float32) + b2_ref[...]

    half = o2.shape[-1] // 2                                    # = y_dim (static)
    mu = o2[:, :half]                                           # (tn, y_dim) f32
    logvar = jnp.tanh(o2[:, half:].astype(eup_dtype))
    inv_var = jnp.exp(-logvar).astype(jnp.float32)              # 1 / exp(logvar)

    # y / y_shuf streamed narrow (bf16 in fast mode); residual math in f32.
    y = y_ref[...].astype(jnp.float32)
    ys = ys_ref[...].astype(jnp.float32)
    # (positive - negative) simplified; padded rows (x = y = ys = 0) cancel
    # exactly because both squared terms go through the identical path.
    diff = inv_var * ((mu - ys) ** 2 - (mu - y) ** 2)           # (tn, y_dim)

    # Row (sublane-group) reduction only: pure VALU vreg adds into (8, y_dim).
    # The cross-lane (axis=-1) reduce happens once, outside the kernel.
    tn, yd = diff.shape
    acc_ref[...] += jnp.sum(diff.reshape(tn // 8, 8, yd), axis=0)

    @pl.when(i == pl.num_programs(1) - 1)
    def _finalize():
        out_ref[...] = acc_ref[...]           # one (8, y_dim) write per core


# --------------------------------------------------------------------------
# Parameter packing (fuse heads; no feature padding)
# --------------------------------------------------------------------------
def pack_params(params, matmul_dtype=jnp.bfloat16):
    (w1m, b1m, w2m, b2m, w1v, b1v, w2v, b2v) = params
    h = w1m.shape[1]
    y_dim = w2m.shape[1]

    w1 = jnp.concatenate([w1m, w1v], axis=1)                    # (x_dim, 2h)
    b1 = jnp.concatenate([b1m, b1v], axis=1)                    # (1, 2h)
    z = jnp.zeros((h, y_dim), w2m.dtype)
    # block-diagonal second layer: [w2m 0; 0 w2v]   (tiny at these dims;
    # split into two dots instead if a v5e profile ever shows MXU-bound)
    w2 = jnp.concatenate([jnp.concatenate([w2m, z], axis=1),
                          jnp.concatenate([z, w2v], axis=1)], axis=0)
    b2 = jnp.concatenate([b2m, b2v], axis=1)                    # (1, 2*y_dim)

    return (w1.astype(matmul_dtype), b1.astype(jnp.float32),
            w2.astype(matmul_dtype), b2.astype(jnp.float32))


# --------------------------------------------------------------------------
# Forward wrapper
# --------------------------------------------------------------------------
def club_sample_forward(x, y, perm, params, *, tile_n=512, core_split=None,
                        matmul_dtype=jnp.bfloat16, eup_dtype=None):
    n, x_dim = x.shape
    y_dim = y.shape[1]
    if core_split is None:
        core_split = _default_core_split()
    if eup_dtype is None:
        eup_dtype = (_default_eup_dtype()
                     if matmul_dtype != jnp.float32 else jnp.float32)

    w1, b1, w2, b2 = pack_params(params, matmul_dtype)

    # torch.randperm equivalent applied in glue; stream y / y_shuf narrow.
    # TODO(synk): for very large batches, pass `perm` via scalar prefetch and
    # gather the permuted rows in-kernel to avoid streaming y twice.
    y_s = y.astype(matmul_dtype)
    ys_s = y_s[perm]

    # tile sizing: multiple of 16 (bf16 packed sublane tile), shrink for tiny
    # batches, keep >= ~4 pipeline steps per core when the grid is core-split.
    per_core = -(-n // core_split)
    tile_n = min(tile_n, _round_up(per_core, 16))
    if core_split > 1:
        tile_n = min(tile_n, _round_up(max(16, per_core // 4), 16))
    tile_n = max(16, tile_n)

    n_pad = _round_up(n, core_split * tile_n)
    tiles_per_core = n_pad // (core_split * tile_n)

    def pad_rows(a):
        return jnp.pad(a, ((0, n_pad - a.shape[0]), (0, 0)))

    x_p = pad_rows(x.astype(matmul_dtype))
    y_p = pad_rows(y_s)
    ys_p = pad_rows(ys_s)

    row_map = lambda c, i: (c * tiles_per_core + i, 0)
    const_map = lambda c, i: (0, 0)

    # generation-aware VMEM budget (double-buffered streams + resident weights)
    isz = lambda a: jnp.dtype(a.dtype).itemsize
    stream_bytes = 2 * tile_n * (x_dim * isz(x_p) + 2 * y_dim * isz(y_p))
    weight_bytes = 2 * sum(int(np.prod(a.shape)) * isz(a)
                           for a in (w1, b1, w2, b2))
    vmem_limit = int(min(_vmem_cap_bytes(),
                         max(32 << 20, 4 * (stream_bytes + weight_bytes))))

    out = pl.pallas_call(
        functools.partial(club_sample_kernel, eup_dtype=eup_dtype),
        out_shape=jax.ShapeDtypeStruct((core_split * 8, y_dim), jnp.float32),
        grid=(core_split, tiles_per_core),
        in_specs=[
            pl.BlockSpec((tile_n, x_dim), row_map),       # x tiles (natural width)
            pl.BlockSpec((tile_n, y_dim), row_map),       # y tiles
            pl.BlockSpec((tile_n, y_dim), row_map),       # y_shuf tiles
            # Weights/biases resident in VMEM (constant index maps).
            # TODO(synk): pipeline_mode=pl.Buffered(1) here for very large
            # x_dim/hidden on v7x to avoid 2x residency of W1/W2.
            pl.BlockSpec((x_dim, w1.shape[1]), const_map),
            pl.BlockSpec((1, b1.shape[1]), const_map),
            pl.BlockSpec((w2.shape[0], w2.shape[1]), const_map),
            pl.BlockSpec((1, b2.shape[1]), const_map),
        ],
        out_specs=pl.BlockSpec((8, y_dim), lambda c, i: (c, 0)),
        scratch_shapes=[pltpu.VMEM((8, y_dim), jnp.float32)],
        compiler_params=pltpu.CompilerParams(
            dimension_semantics=("parallel", "arbitrary"),
            vmem_limit_bytes=vmem_limit,
        ),
    )(x_p, y_p, ys_p, w1, b1, w2, b2)

    # final cheap cross-lane / cross-core reduce in XLA glue
    return jnp.sum(out) / (2.0 * n)


# --------------------------------------------------------------------------
# Init + references
# --------------------------------------------------------------------------
def init_params(key, x_dim, y_dim, hidden_size):
    """Weights stored as [in, out], bias as [1, out] (pre-transposed Linear)."""
    h = hidden_size // 2
    ks = jax.random.split(key, 8)

    def lin(kw, kb, fan_in, fan_out):
        bound = 1.0 / np.sqrt(fan_in)
        w = jax.random.uniform(kw, (fan_in, fan_out), jnp.float32, -bound, bound)
        b = jax.random.uniform(kb, (1, fan_out), jnp.float32, -bound, bound)
        return w, b

    w1m, b1m = lin(ks[0], ks[1], x_dim, h)
    w2m, b2m = lin(ks[2], ks[3], h, y_dim)
    w1v, b1v = lin(ks[4], ks[5], x_dim, h)
    w2v, b2v = lin(ks[6], ks[7], h, y_dim)
    return (w1m, b1m, w2m, b2m, w1v, b1v, w2v, b2v)


def reference_forward(x, y, perm, params, matmul_dtype=jnp.float32,
                      eup_dtype=jnp.float32):
    """Pure-JAX reference mirroring the kernel's compute dtypes.
    With matmul_dtype=eup_dtype=float32 this is exact PyTorch CLUBSample.forward."""
    (w1m, b1m, w2m, b2m, w1v, b1v, w2v, b2v) = params
    md = matmul_dtype
    dot = functools.partial(jnp.dot, preferred_element_type=jnp.float32)

    xd = x.astype(md)
    h_mu = jnp.maximum(dot(xd, w1m.astype(md)) + b1m, 0.0).astype(md)
    mu = dot(h_mu, w2m.astype(md)) + b2m
    h_lv = jnp.maximum(dot(xd, w1v.astype(md)) + b1v, 0.0).astype(md)
    o_lv = dot(h_lv, w2v.astype(md)) + b2v

    logvar = jnp.tanh(o_lv.astype(eup_dtype))
    inv_var = jnp.exp(-logvar).astype(jnp.float32)

    yq = y.astype(md).astype(jnp.float32)
    pos = -(mu - yq) ** 2 * inv_var
    neg = -(mu - yq[perm]) ** 2 * inv_var
    return jnp.mean(pos.sum(-1) - neg.sum(-1)) / 2.0


# --------------------------------------------------------------------------
if __name__ == "__main__":
    # Small shapes consistent with the module: batch=8, x_dim=32, y_dim=16, hidden=32
    N, X_DIM, Y_DIM, HIDDEN = 8, 32, 16, 32

    key = jax.random.PRNGKey(0)
    kx, ky, kp, kperm = jax.random.split(key, 4)

    x = jax.random.normal(kx, (N, X_DIM), jnp.float32)
    y = jax.random.normal(ky, (N, Y_DIM), jnp.float32)
    params = init_params(kp, X_DIM, Y_DIM, HIDDEN)

    # deterministic stand-in for torch.randperm(sample_size)
    perm = jax.random.permutation(kperm, N)

    # 1) exact-f32 mode: matches PyTorch CLUBSample.forward numerics.
    out_f32 = jax.block_until_ready(
        club_sample_forward(x, y, perm, params, matmul_dtype=jnp.float32))
    ref_f32 = jax.block_until_ready(
        reference_forward(x, y, perm, params, jnp.float32, jnp.float32))
    assert np.allclose(np.asarray(out_f32), np.asarray(ref_f32),
                       rtol=1e-4, atol=1e-4), (float(out_f32), float(ref_f32))

    # 2) fast mode (default): bf16 streams/matmuls, bf16 EUP on v6e/v7x;
    #    verified against a dtype-mirrored reference.
    out_fast = jax.block_until_ready(club_sample_forward(x, y, perm, params))
    ref_fast = jax.block_until_ready(
        reference_forward(x, y, perm, params, jnp.bfloat16, _default_eup_dtype()))
    assert np.allclose(np.asarray(out_fast), np.asarray(ref_fast),
                       rtol=2e-3, atol=2e-3), (float(out_fast), float(ref_fast))

    print("KERNEL_OK")
</pallas_src>

<mosaic_0001>
module attributes {stable_mosaic.version = 11 : i64} {
  func.func @club_sample_kernel(%arg0: i32, %arg1: i32, %arg2: memref<16x32xf32, #tpu.memory_space<vmem>>, %arg3: memref<16x16xf32, #tpu.memory_space<vmem>>, %arg4: memref<16x16xf32, #tpu.memory_space<vmem>>, %arg5: memref<32x32xf32, #tpu.memory_space<vmem>>, %arg6: memref<1x32xf32, #tpu.memory_space<vmem>>, %arg7: memref<32x32xf32, #tpu.memory_space<vmem>>, %arg8: memref<1x32xf32, #tpu.memory_space<vmem>>, %arg9: memref<8x16xf32, #tpu.memory_space<vmem>>, %arg10: memref<8x16xf32, #tpu.memory_space<vmem>>) attributes {dimension_semantics = [#tpu.dimension_semantics<parallel>, #tpu.dimension_semantics<arbitrary>], iteration_bounds = array<i64: 1, 1>, scalar_prefetch = 0 : i64, scratch_operands = 1 : i64, tpu.core_type = #tpu.core_type<tc>, window_params = [{transform_indices = @transform_0, window_bounds = array<i64: 16, 32>}, {transform_indices = @transform_1, window_bounds = array<i64: 16, 16>}, {transform_indices = @transform_2, window_bounds = array<i64: 16, 16>}, {pipeline_mode = #tpu.pipeline_mode<synchronous>, transform_indices = @transform_3, window_bounds = array<i64: 32, 32>}, {pipeline_mode = #tpu.pipeline_mode<synchronous>, transform_indices = @transform_4, window_bounds = array<i64: 1, 32>}, {pipeline_mode = #tpu.pipeline_mode<synchronous>, transform_indices = @transform_5, window_bounds = array<i64: 32, 32>}, {pipeline_mode = #tpu.pipeline_mode<synchronous>, transform_indices = @transform_6, window_bounds = array<i64: 1, 32>}, {transform_indices = @transform_7, window_bounds = array<i64: 8, 16>}]} {
    %c0_i32 = arith.constant 0 : i32
    %0 = arith.cmpi eq, %arg1, %c0_i32 : i32
    %1 = arith.extui %0 : i1 to i32
    %c0_i32_0 = arith.constant 0 : i32
    %2 = arith.cmpi ne, %1, %c0_i32_0 : i32
    scf.if %2 {
      %cst_24 = arith.constant 0.000000e+00 : f32
      %38 = vector.broadcast %cst_24 : f32 to vector<8x16xf32>
      %c0_25 = arith.constant 0 : index
      %c0_26 = arith.constant 0 : index
      %39 = vector.load %arg10[%c0_25, %c0_26] : memref<8x16xf32, #tpu.memory_space<vmem>>, vector<8x16xf32>
      tpu.vector_store %arg10[%c0_25, %c0_26], %38 {strides = array<i32>} : memref<8x16xf32, #tpu.memory_space<vmem>>, vector<8x16xf32>,
    } else {
    }
    %c0 = arith.constant 0 : index
    %c0_1 = arith.constant 0 : index
    %3 = vector.load %arg2[%c0, %c0_1] : memref<16x32xf32, #tpu.memory_space<vmem>>, vector<16x32xf32>
    %c0_2 = arith.constant 0 : index
    %c0_3 = arith.constant 0 : index
    %4 = vector.load %arg5[%c0_2, %c0_3] : memref<32x32xf32, #tpu.memory_space<vmem>>, vector<32x32xf32>
    %cst = arith.constant dense<0.000000e+00> : vector<16x32xf32>
    %5 = tpu.matmul %3, %4, %cst {dimension_numbers = #tpu.dot_dimension_numbers<[1], [0], [0], [1], [0, 0, 1, 1], [], []>} : vector<16x32xf32>, vector<32x32xf32>, vector<16x32xf32> -> vector<16x32xf32>
    %c0_4 = arith.constant 0 : index
    %c0_5 = arith.constant 0 : index
    %6 = vector.load %arg6[%c0_4, %c0_5] : memref<1x32xf32, #tpu.memory_space<vmem>>, vector<1x32xf32>
    %7 = vector.broadcast %6 : vector<1x32xf32> to vector<16x32xf32>
    %8 = arith.addf %5, %7 : vector<16x32xf32>
    %cst_6 = arith.constant 0.000000e+00 : f32
    %9 = vector.broadcast %cst_6 : f32 to vector<16x32xf32>
    %10 = arith.maximumf %8, %9 : vector<16x32xf32>
    %c0_7 = arith.constant 0 : index
    %c0_8 = arith.constant 0 : index
    %11 = vector.load %arg7[%c0_7, %c0_8] : memref<32x32xf32, #tpu.memory_space<vmem>>, vector<32x32xf32>
    %cst_9 = arith.constant dense<0.000000e+00> : vector<16x32xf32>
    %12 = tpu.matmul %10, %11, %cst_9 {dimension_numbers = #tpu.dot_dimension_numbers<[1], [0], [0], [1], [0, 0, 1, 1], [], []>} : vector<16x32xf32>, vector<32x32xf32>, vector<16x32xf32> -> vector<16x32xf32>
    %c0_10 = arith.constant 0 : index
    %c0_11 = arith.constant 0 : index
    %13 = vector.load %arg8[%c0_10, %c0_11] : memref<1x32xf32, #tpu.memory_space<vmem>>, vector<1x32xf32>
    %14 = vector.broadcast %13 : vector<1x32xf32> to vector<16x32xf32>
    %15 = arith.addf %12, %14 : vector<16x32xf32>
    %16 = vector.extract_strided_slice %15 {offsets = [0, 0], sizes = [16, 16], strides = [1, 1]} : vector<16x32xf32> to vector<16x16xf32>
    %17 = vector.extract_strided_slice %15 {offsets = [0, 16], sizes = [16, 16], strides = [1, 1]} : vector<16x32xf32> to vector<16x16xf32>
    %18 = math.tanh %17 : vector<16x16xf32>
    %cst_12 = arith.constant 0.000000e+00 : f32
    %19 = vector.broadcast %cst_12 : f32 to vector<16x16xf32>
    %20 = arith.subf %19, %18 : vector<16x16xf32>
    %21 = math.exp %20 : vector<16x16xf32>
    %c0_13 = arith.constant 0 : index
    %c0_14 = arith.constant 0 : index
    %22 = vector.load %arg3[%c0_13, %c0_14] : memref<16x16xf32, #tpu.memory_space<vmem>>, vector<16x16xf32>
    %c0_15 = arith.constant 0 : index
    %c0_16 = arith.constant 0 : index
    %23 = vector.load %arg4[%c0_15, %c0_16] : memref<16x16xf32, #tpu.memory_space<vmem>>, vector<16x16xf32>
    %24 = arith.subf %16, %23 : vector<16x16xf32>
    %25 = arith.mulf %24, %24 : vector<16x16xf32>
    %26 = arith.subf %16, %22 : vector<16x16xf32>
    %27 = arith.mulf %26, %26 : vector<16x16xf32>
    %28 = arith.subf %25, %27 : vector<16x16xf32>
    %29 = arith.mulf %21, %28 : vector<16x16xf32>
    %c0_17 = arith.constant 0 : index
    %c0_18 = arith.constant 0 : index
    %30 = vector.load %arg10[%c0_17, %c0_18] : memref<8x16xf32, #tpu.memory_space<vmem>>, vector<8x16xf32>
    %31 = vector.shape_cast %29 : vector<16x16xf32> to vector<2x8x16xf32>
    %cst_19 = arith.constant dense<0.000000e+00> : vector<8x16xf32>
    %32 = vector.multi_reduction <add>, %31, %cst_19 [0] : vector<2x8x16xf32> to vector<8x16xf32>
    %33 = arith.addf %30, %32 : vector<8x16xf32>
    %c0_20 = arith.constant 0 : index
    %c0_21 = arith.constant 0 : index
    %34 = vector.load %arg10[%c0_20, %c0_21] : memref<8x16xf32, #tpu.memory_space<vmem>>, vector<8x16xf32>
    tpu.vector_store %arg10[%c0_20, %c0_21], %33 {strides = array<i32>} : memref<8x16xf32, #tpu.memory_space<vmem>>, vector<8x16xf32>,
    %c0_i32_22 = arith.constant 0 : i32
    %35 = arith.cmpi eq, %arg1, %c0_i32_22 : i32
    %36 = arith.extui %35 : i1 to i32
    %c0_i32_23 = arith.constant 0 : i32
    %37 = arith.cmpi ne, %36, %c0_i32_23 : i32
    scf.if %37 {
      %c0_24 = arith.constant 0 : index
      %c0_25 = arith.constant 0 : index
      %38 = vector.load %arg10[%c0_24, %c0_25] : memref<8x16xf32, #tpu.memory_space<vmem>>, vector<8x16xf32>
      %c0_26 = arith.constant 0 : index
      %c0_27 = arith.constant 0 : index
      %39 = vector.load %arg9[%c0_26, %c0_27] : memref<8x16xf32, #tpu.memory_space<vmem>>, vector<8x16xf32>
      tpu.vector_store %arg9[%c0_26, %c0_27], %38 {strides = array<i32>} : memref<8x16xf32, #tpu.memory_space<vmem>>, vector<8x16xf32>,
    } else {
    }
    return
  }
  func.func @transform_0(%arg0: i32, %arg1: i32) -> (i32, i32) {
    %c1_i32 = arith.constant 1 : i32
    %0 = arith.muli %arg0, %c1_i32 : i32
    %1 = arith.addi %0, %arg1 : i32
    %c0_i32 = arith.constant 0 : i32
    %c0_i32_0 = arith.constant 0 : i32
    return %1, %c0_i32 : i32, i32
  }
  func.func @transform_1(%arg0: i32, %arg1: i32) -> (i32, i32) {
    %c1_i32 = arith.constant 1 : i32
    %0 = arith.muli %arg0, %c1_i32 : i32
    %1 = arith.addi %0, %arg1 : i32
    %c0_i32 = arith.constant 0 : i32
    %c0_i32_0 = arith.constant 0 : i32
    return %1, %c0_i32 : i32, i32
  }
  func.func @transform_2(%arg0: i32, %arg1: i32) -> (i32, i32) {
    %c1_i32 = arith.constant 1 : i32
    %0 = arith.muli %arg0, %c1_i32 : i32
    %1 = arith.addi %0, %arg1 : i32
    %c0_i32 = arith.constant 0 : i32
    %c0_i32_0 = arith.constant 0 : i32
    return %1, %c0_i32 : i32, i32
  }
  func.func @transform_3(%arg0: i32, %arg1: i32) -> (i32, i32) {
    %c0_i32 = arith.constant 0 : i32
    %c0_i32_0 = arith.constant 0 : i32
    %c0_i32_1 = arith.constant 0 : i32
    return %c0_i32, %c0_i32_0 : i32, i32
  }
  func.func @transform_4(%arg0: i32, %arg1: i32) -> (i32, i32) {
    %c0_i32 = arith.constant 0 : i32
    %c0_i32_0 = arith.constant 0 : i32
    %c0_i32_1 = arith.constant 0 : i32
    return %c0_i32, %c0_i32_0 : i32, i32
  }
  func.func @transform_5(%arg0: i32, %arg1: i32) -> (i32, i32) {
    %c0_i32 = arith.constant 0 : i32
    %c0_i32_0 = arith.constant 0 : i32
    %c0_i32_1 = arith.constant 0 : i32
    return %c0_i32, %c0_i32_0 : i32, i32
  }
  func.func @transform_6(%arg0: i32, %arg1: i32) -> (i32, i32) {
    %c0_i32 = arith.constant 0 : i32
    %c0_i32_0 = arith.constant 0 : i32
    %c0_i32_1 = arith.constant 0 : i32
    return %c0_i32, %c0_i32_0 : i32, i32
  }
  func.func @transform_7(%arg0: i32, %arg1: i32) -> (i32, i32) {
    %c0_i32 = arith.constant 0 : i32
    %c0_i32_0 = arith.constant 0 : i32
    return %arg0, %c0_i32 : i32, i32
  }
}

</mosaic_0001>

<llo_original>
// kernel: tpu_custom_call.1
$region0: #{tpu_custom_call.1}
  #allocation0 [shape = 'u32[]', space=smem, size = 0x4, offset = 0x4, fixed_abs, tag = 'smem constant byte address 0x4 - core index']
  #allocation1 [shape = 'u32[144,128]{1,0:T(1,128)}', space=vmem, size = 0x12000, scoped, tag = 'internal scratch']
  #allocation2 [shape = 'f32[8,16]{1,0:T(8,128)}', space=vmem, size = 0x1000, scoped, tag = 'scratch operand']
  %s0 = inlined_call_operand.hbm [shape: f32[16,32], index: 0, kind: input, shape index: {}]
  %s1 = inlined_call_operand.hbm [shape: f32[16,16], index: 1, kind: input, shape index: {}]
  %s2 = inlined_call_operand.hbm [shape: f32[16,16], index: 2, kind: input, shape index: {}]
  %s3 = inlined_call_operand.hbm [shape: f32[32,32], index: 3, kind: input, shape index: {}]
  %s4 = inlined_call_operand.vmem [shape: f32[1,32], index: 4, kind: input, shape index: {}]
  %s5 = inlined_call_operand.hbm [shape: f32[32,32], index: 5, kind: input, shape index: {}]
  %s6 = inlined_call_operand.vmem [shape: f32[1,32], index: 6, kind: input, shape index: {}]
  %s7 = inlined_call_operand.hbm [shape: f32[8,16], index: 7, kind: output, shape index: {}]
  %s8 = sld [smem:[#allocation0]]
  $region66: #{tpu_custom_call.1} parent=0
    _
  %s10 = ssub.s32 1, %s8
  %s11 = scalar_select 0, %s10, %s8
  $region1: #{tpu_custom_call.1} parent=0
    #allocation3 [shape = 'u8[8192]{0}', space=vmem, size = 0x2000, scoped, tag = 'input window, operand 0, single buffered']
    #allocation4 [shape = 's32[1]{0}', space=sflag, size = 0x4, scoped, tag = 'scoped memory for tpu_custom_call.1']
    #allocation5 [shape = 's32[1]{0}', space=sflag, size = 0x4, scoped, tag = 'scoped memory for tpu_custom_call.1']
    #allocation6 [shape = 'u8[8192]{0}', space=vmem, size = 0x2000, scoped, tag = 'input window, operand 1, single buffered']
    #allocation7 [shape = 's32[1]{0}', space=sflag, size = 0x4, scoped, tag = 'scoped memory for tpu_custom_call.1']
    #allocation8 [shape = 'u8[8192]{0}', space=vmem, size = 0x2000, scoped, tag = 'input window, operand 2, single buffered']
    #allocation9 [shape = 'u8[16384]{0}', space=vmem, size = 0x4000, scoped, tag = 'input window, operand 3, single buffered']
    #allocation10 [shape = 's32[1]{0}', space=sflag, size = 0x4, scoped, tag = 'scoped memory for tpu_custom_call.1']
    #allocation11 [shape = 'u8[16384]{0}', space=vmem, size = 0x4000, scoped, tag = 'input window, operand 5, single buffered']
    #allocation12 [shape = 'u8[4096]{0}', space=vmem, size = 0x1000, scoped, tag = 'output window, operand 0, single buffered']
    %12 = vsyncpa [#allocation4], 0
    %13 = vsyncpa [#allocation7], 0
    %14 = vsyncpa [#allocation10], 0
    %15 = vsyncpa [#allocation5], 0
    // Predicated region
    $region2: #{tpu_custom_call.1} parent=1 // pred_check
      _
    $region3: #{tpu_custom_call.1} parent=1 // pred_check_branch
      %17 = sbr.rel (0) target = $region5
    $region4: #{tpu_custom_call.1} parent=1 // pred_region
      %s18 = sadd.s32 0, 0
      %s19 = smul.u32 2, %s18
      %s21 = ssub.s32 256, 256
      %22 = vsyncadd [#allocation4], %s21
      %s23 = smul.addr %s19, 128
      %s24 = scalar_lea.hbm %s0, %s23
      %s25 = sshll.u32 [#allocation3], 4
      %s26 = int_to_ptr.vmem [resolvable:$true] %s25
      %31 = dma.hbm_to_vmem [thread:$0]  %s24, 256, %s26, [#allocation4], 128, 128, 8
    $region5: #{tpu_custom_call.1} parent=1 // pred_fallthru
      _
    // Predicated region
    $region6: #{tpu_custom_call.1} parent=1 // pred_check
      _
    $region7: #{tpu_custom_call.1} parent=1 // pred_check_branch
      %33 = sbr.rel (0) target = $region9
    $region8: #{tpu_custom_call.1} parent=1 // pred_region
      %s34 = sadd.s32 0, 0
      %s35 = smul.u32 2, %s34
      %s37 = ssub.s32 256, 256
      %38 = vsyncadd [#allocation7], %s37
      %s39 = smul.addr %s35, 128
      %s40 = scalar_lea.hbm %s1, %s39
      %s41 = sshll.u32 [#allocation6], 4
      %s42 = int_to_ptr.vmem [resolvable:$true] %s41
      %47 = dma.hbm_to_vmem [thread:$0]  %s40, 256, %s42, [#allocation7], 128, 128, 8
    $region9: #{tpu_custom_call.1} parent=1 // pred_fallthru
      _
    // Predicated region
    $region10: #{tpu_custom_call.1} parent=1 // pred_check
      _
    $region11: #{tpu_custom_call.1} parent=1 // pred_check_branch
      %49 = sbr.rel (0) target = $region13
    $region12: #{tpu_custom_call.1} parent=1 // pred_region
      %s50 = sadd.s32 0, 0
      %s51 = smul.u32 2, %s50
      %s53 = ssub.s32 256, 256
      %54 = vsyncadd [#allocation7], %s53
      %s55 = smul.addr %s51, 128
      %s56 = scalar_lea.hbm %s2, %s55
      %s57 = sshll.u32 [#allocation8], 4
      %s58 = int_to_ptr.vmem [resolvable:$true] %s57
      %63 = dma.hbm_to_vmem [thread:$0]  %s56, 256, %s58, [#allocation7], 128, 128, 8
    $region13: #{tpu_custom_call.1} parent=1 // pred_fallthru
      _
    // Predicated region
    $region14: #{tpu_custom_call.1} parent=1 // pred_check
      _
    $region15: #{tpu_custom_call.1} parent=1 // pred_check_branch
      %65 = sbr.rel (0) target = $region17
    $region16: #{tpu_custom_call.1} parent=1 // pred_region
      %s67 = ssub.s32 512, 512
      %68 = vsyncadd [#allocation10], %s67
      %s69 = sshll.u32 [#allocation9], 4
      %s70 = int_to_ptr.vmem [resolvable:$true] %s69
      %75 = dma.hbm_to_vmem [thread:$0]  %s3, 512, %s70, [#allocation10], 128, 128, 8
    $region17: #{tpu_custom_call.1} parent=1 // pred_fallthru
      _
    // Predicated region
    $region18: #{tpu_custom_call.1} parent=1 // pred_check
      _
    $region19: #{tpu_custom_call.1} parent=1 // pred_check_branch
      %77 = sbr.rel (0) target = $region21
    $region20: #{tpu_custom_call.1} parent=1 // pred_region
      _
    $region21: #{tpu_custom_call.1} parent=1 // pred_fallthru
      _
    // Predicated region
    $region22: #{tpu_custom_call.1} parent=1 // pred_check
      _
    $region23: #{tpu_custom_call.1} parent=1 // pred_check_branch
      %79 = sbr.rel (0) target = $region25
    $region24: #{tpu_custom_call.1} parent=1 // pred_region
      %s81 = ssub.s32 512, 512
      %82 = vsyncadd [#allocation10], %s81
      %s83 = sshll.u32 [#allocation11], 4
      %s84 = int_to_ptr.vmem [resolvable:$true] %s83
      %89 = dma.hbm_to_vmem [thread:$0]  %s5, 512, %s84, [#allocation10], 128, 128, 8
    $region25: #{tpu_custom_call.1} parent=1 // pred_fallthru
      _
    // Predicated region
    $region26: #{tpu_custom_call.1} parent=1 // pred_check
      _
    $region27: #{tpu_custom_call.1} parent=1 // pred_check_branch
      %91 = sbr.rel (0) target = $region29
    $region28: #{tpu_custom_call.1} parent=1 // pred_region
      _
    $region29: #{tpu_custom_call.1} parent=1 // pred_fallthru
      _
    // Predicated region
    $region30: #{tpu_custom_call.1} parent=1 // pred_check
      _
    $region31: #{tpu_custom_call.1} parent=1 // pred_check_branch
      %93 = sbr.rel (0) target = $region33
    $region32: #{tpu_custom_call.1} parent=1 // pred_region
      %94 = dma.done [#allocation4], 256
    $region33: #{tpu_custom_call.1} parent=1 // pred_fallthru
      _
    // Predicated region
    $region34: #{tpu_custom_call.1} parent=1 // pred_check
      _
    $region35: #{tpu_custom_call.1} parent=1 // pred_check_branch
      %96 = sbr.rel (0) target = $region37
    $region36: #{tpu_custom_call.1} parent=1 // pred_region
      %97 = dma.done [#allocation7], 256
    $region37: #{tpu_custom_call.1} parent=1 // pred_fallthru
      _
    // Predicated region
    $region38: #{tpu_custom_call.1} parent=1 // pred_check
      _
    $region39: #{tpu_custom_call.1} parent=1 // pred_check_branch
      %99 = sbr.rel (0) target = $region41
    $region40: #{tpu_custom_call.1} parent=1 // pred_region
      %100 = dma.done [#allocation7], 256
    $region41: #{tpu_custom_call.1} parent=1 // pred_fallthru
      _
    // Predicated region
    $region42: #{tpu_custom_call.1} parent=1 // pred_check
      _
    $region43: #{tpu_custom_call.1} parent=1 // pred_check_branch
      %102 = sbr.rel (0) target = $region45
    $region44: #{tpu_custom_call.1} parent=1 // pred_region
      %103 = dma.done [#allocation10], 512
    $region45: #{tpu_custom_call.1} parent=1 // pred_fallthru
      _
    // Predicated region
    $region46: #{tpu_custom_call.1} parent=1 // pred_check
      _
    $region47: #{tpu_custom_call.1} parent=1 // pred_check_branch
      %105 = sbr.rel (0) target = $region49
    $region48: #{tpu_custom_call.1} parent=1 // pred_region
      %106 = dma.done [#allocation10], 512
    $region49: #{tpu_custom_call.1} parent=1 // pred_fallthru
      _
    %s107 = sadd.s32 0, 0
    %s108 = smul.u32 2, %s107
    %s109 = sadd.s32 0, 0
    %s110 = smul.u32 2, %s109
    %s111 = sadd.s32 0, 0
    %s112 = smul.u32 2, %s111
    %p113 = scmp.eq.s32.totalorder 0, 0
    // Predicated region
    $region50: #{tpu_custom_call.1} parent=1 // pred_check
      %p114 = pneg %p113
    $region51: #{tpu_custom_call.1} parent=1 // pred_check_branch
      %116 = sbr.rel (%p114) target = $region53
    $region52: #{tpu_custom_call.1} parent=1 // pred_region
      %vm117 = vcmask 130048
      %118 = vst.msk [vmem:[#allocation2] sm:$0xff] %vm117, 0.0
    $region53: #{tpu_custom_call.1} parent=1 // pred_fallthru
      _
    %v119 = vld [vmem:[#allocation3] sm:$0xff]
    %v120 = vld [vmem:[#allocation3 + $0x8] sm:$0xff]
    %v121 = vld [vmem:[#allocation9] sm:$0xff]
    %v122 = vld [vmem:[#allocation9 + $0x8] sm:$0xff]
    %v123 = vld [vmem:[#allocation9 + $0x10] sm:$0xff]
    %v124 = vld [vmem:[#allocation9 + $0x18] sm:$0xff]
    %v125 = vld [vmem:[%s4] sm:$0x1]
    %v127 = vlaneseq
    %v128 = vshrl.u32 %v127, 7
    %v129 = vsub.s32 0, %v128
    %v130 = vrot.slane %v125, %v129
    %vm132 = vcmask 261120
    %v134 = vsel %vm132, %v119, 0
    %v137 = vsel %vm132, %v120, 0
    %139 = vmatprep.subr.mxu0 0.0
    %140 = vmatpush1.msra.mxu0 0.0
    %141 = vmatprep.subr.mxu0 0.0
    %142 = vmatpush1.msra.mxu0 0.0
    %143 = vmatprep.subr.mxu0 0.0
    %144 = vmatpush1.msra.mxu0 0.0
    %145 = vmatprep.subr.mxu0 0.0
    %146 = vmatpush1.msra.mxu0 0.0
    %147 = vmatprep.subr.mxu0 0.0
    %148 = vmatpush1.msra.mxu0 0.0
    %149 = vmatprep.subr.mxu0 0.0
    %150 = vmatpush1.msra.mxu0 0.0
    %151 = vmatprep.subr.mxu0 0.0
    %152 = vmatpush1.msra.mxu0 0.0
    %153 = vmatprep.subr.mxu0 0.0
    %154 = vmatpush1.msra.mxu0 0.0
    %155 = vmatprep.subr.mxu0 0.0
    %156 = vmatpush1.msra.mxu0 0.0
    %157 = vmatprep.subr.mxu0 0.0
    %158 = vmatpush1.msra.mxu0 0.0
    %159 = vmatprep.subr.mxu0 0.0
    %160 = vmatpush1.msra.mxu0 0.0
    %161 = vmatprep.subr.mxu0 0.0
    %162 = vmatpush1.msra.mxu0 0.0
    %163 = vmatprep.subr.mxu0 0.0
    %164 = vmatpush1.msra.mxu0 %v124
    %165 = vmatprep.subr.mxu0 0.0
    %166 = vmatpush1.msra.mxu0 %v123
    %167 = vmatprep.subr.mxu0 0.0
    %168 = vmatpush1.msra.mxu0 %v122
    %169 = vmatprep.subr.mxu0 0.0
    %170 = vmatpush1.msra.mxu0 %v121
    %171 = vmatprep.subr.mxu0 0.0
    %172 = vmatpush2.msra.mxu0 0.0
    %173 = vmatprep.subr.mxu0 0.0
    %174 = vmatpush2.msra.mxu0 0.0
    %175 = vmatprep.subr.mxu0 0.0
    %176 = vmatpush2.msra.mxu0 0.0
    %177 = vmatprep.subr.mxu0 0.0
    %178 = vmatpush2.msra.mxu0 0.0
    %179 = vmatprep.subr.mxu0 0.0
    %180 = vmatpush2.msra.mxu0 0.0
    %181 = vmatprep.subr.mxu0 0.0
    %182 = vmatpush2.msra.mxu0 0.0
    %183 = vmatprep.subr.mxu0 0.0
    %184 = vmatpush2.msra.mxu0 0.0
    %185 = vmatprep.subr.mxu0 0.0
    %186 = vmatpush2.msra.mxu0 0.0
    %187 = vmatprep.subr.mxu0 0.0
    %188 = vmatpush2.msra.mxu0 0.0
    %189 = vmatprep.subr.mxu0 0.0
    %190 = vmatpush2.msra.mxu0 0.0
    %191 = vmatprep.subr.mxu0 0.0
    %192 = vmatpush2.msra.mxu0 0.0
    %193 = vmatprep.subr.mxu0 0.0
    %194 = vmatpush2.msra.mxu0 0.0
    %195 = vmatprep.subr.mxu0 0.0
    %196 = vmatpush2.msra.mxu0 0.0
    %197 = vmatprep.subr.mxu0 0.0
    %198 = vmatpush2.msra.mxu0 0.0
    %199 = vmatprep.subr.mxu0 0.0
    %200 = vmatpush2.msra.mxu0 0.0
    %201 = vmatprep.subr.mxu0 0.0
    %202 = vmatpush2.msra.mxu0 0.0
    %203 = vmatprep.mubr.f32.mxu0 0.0
    %204 = vmatmul.mubr.f32.gmra.mxu0 %v134
    %v205 = vpop.f32.mrf.mxu0
    %v206 = vadd.f32 %v130, %v205
    %v207 = vpop.f32.mrf.mxu0
    %208 = vmatprep.mubr.f32.mxu0 0.0
    %209 = vmatmul.mubr.f32.gmra.mxu0 %v137
    %v210 = vpop.f32.mrf.mxu0
    %v211 = vadd.f32 %v130, %v210
    %v212 = vpop.f32.mrf.mxu0
    %213 = vdwg.mxu0
    %v214 = vmax.f32 %v206, 0.0
    %v215 = vmax.f32 %v211, 0.0
    %v216 = vld [vmem:[#allocation11] sm:$0xff]
    %v217 = vld [vmem:[#allocation11 + $0x8] sm:$0xff]
    %v218 = vld [vmem:[#allocation11 + $0x10] sm:$0xff]
    %v219 = vld [vmem:[#allocation11 + $0x18] sm:$0xff]
    %v220 = vld [vmem:[%s6] sm:$0x1]
    %v222 = vlaneseq
    %v223 = vshrl.u32 %v222, 7
    %v224 = vsub.s32 0, %v223
    %v225 = vrot.slane %v220, %v224
    %v228 = vsel %vm132, %v214, 0
    %v231 = vsel %vm132, %v215, 0
    %233 = vmatprep.subr.mxu0 0.0
    %234 = vmatpush1.msra.mxu0 0.0
    %235 = vmatprep.subr.mxu0 0.0
    %236 = vmatpush1.msra.mxu0 0.0
    %237 = vmatprep.subr.mxu0 0.0
    %238 = vmatpush1.msra.mxu0 0.0
    %239 = vmatprep.subr.mxu0 0.0
    %240 = vmatpush1.msra.mxu0 0.0
    %241 = vmatprep.subr.mxu0 0.0
    %242 = vmatpush1.msra.mxu0 0.0
    %243 = vmatprep.subr.mxu0 0.0
    %244 = vmatpush1.msra.mxu0 0.0
    %245 = vmatprep.subr.mxu0 0.0
    %246 = vmatpush1.msra.mxu0 0.0
    %247 = vmatprep.subr.mxu0 0.0
    %248 = vmatpush1.msra.mxu0 0.0
    %249 = vmatprep.subr.mxu0 0.0
    %250 = vmatpush1.msra.mxu0 0.0
    %251 = vmatprep.subr.mxu0 0.0
    %252 = vmatpush1.msra.mxu0 0.0
    %253 = vmatprep.subr.mxu0 0.0
    %254 = vmatpush1.msra.mxu0 0.0
    %255 = vmatprep.subr.mxu0 0.0
    %256 = vmatpush1.msra.mxu0 0.0
    %257 = vmatprep.subr.mxu0 0.0
    %258 = vmatpush1.msra.mxu0 %v219
    %259 = vmatprep.subr.mxu0 0.0
    %260 = vmatpush1.msra.mxu0 %v218
    %261 = vmatprep.subr.mxu0 0.0
    %262 = vmatpush1.msra.mxu0 %v217
    %263 = vmatprep.subr.mxu0 0.0
    %264 = vmatpush1.msra.mxu0 %v216
    %265 = vmatprep.subr.mxu0 0.0
    %266 = vmatpush2.msra.mxu0 0.0
    %267 = vmatprep.subr.mxu0 0.0
    %268 = vmatpush2.msra.mxu0 0.0
    %269 = vmatprep.subr.mxu0 0.0
    %270 = vmatpush2.msra.mxu0 0.0
    %271 = vmatprep.subr.mxu0 0.0
    %272 = vmatpush2.msra.mxu0 0.0
    %273 = vmatprep.subr.mxu0 0.0
    %274 = vmatpush2.msra.mxu0 0.0
    %275 = vmatprep.subr.mxu0 0.0
    %276 = vmatpush2.msra.mxu0 0.0
    %277 = vmatprep.subr.mxu0 0.0
    %278 = vmatpush2.msra.mxu0 0.0
    %279 = vmatprep.subr.mxu0 0.0
    %280 = vmatpush2.msra.mxu0 0.0
    %281 = vmatprep.subr.mxu0 0.0
    %282 = vmatpush2.msra.mxu0 0.0
    %283 = vmatprep.subr.mxu0 0.0
    %284 = vmatpush2.msra.mxu0 0.0
    %285 = vmatprep.subr.mxu0 0.0
    %286 = vmatpush2.msra.mxu0 0.0
    %287 = vmatprep.subr.mxu0 0.0
    %288 = vmatpush2.msra.mxu0 0.0
    %289 = vmatprep.subr.mxu0 0.0
    %290 = vmatpush2.msra.mxu0 0.0
    %291 = vmatprep.subr.mxu0 0.0
    %292 = vmatpush2.msra.mxu0 0.0
    %293 = vmatprep.subr.mxu0 0.0
    %294 = vmatpush2.msra.mxu0 0.0
    %295 = vmatprep.subr.mxu0 0.0
    %296 = vmatpush2.msra.mxu0 0.0
    %297 = vmatprep.mubr.f32.mxu0 0.0
    %298 = vmatmul.mubr.f32.gmra.mxu0 %v228
    %v299 = vpop.f32.mrf.mxu0
    %v300 = vadd.f32 %v225, %v299
    %v301 = vpop.f32.mrf.mxu0
    %302 = vmatprep.mubr.f32.mxu0 0.0
    %303 = vmatmul.mubr.f32.gmra.mxu0 %v231
    %v304 = vpop.f32.mrf.mxu0
    %v305 = vadd.f32 %v225, %v304
    %v306 = vpop.f32.mrf.mxu0
    %307 = vdwg.mxu0
    %v308 = vtanh.pop %v300
    %v309 = vtanh.pop %v305
    %v310 = vsub.f32 0.0, %v308
    %v311 = vsub.f32 0.0, %v309
    %v312 = vmul.f32 %v310, 1.442695
    %v313 = vpow.pop %v312
    %v314 = vmul.f32 %v311, 1.442695
    %v315 = vpow.pop %v314
    %v316 = vld [vmem:[#allocation6] sm:$0xff]
    %v317 = vld [vmem:[#allocation6 + $0x8] sm:$0xff]
    %v318 = vld [vmem:[#allocation8] sm:$0xff]
    %v319 = vld [vmem:[#allocation8 + $0x8] sm:$0xff]
    %v320 = vsub.f32 %v300, %v318
    %v321 = vsub.f32 %v305, %v319
    %v322 = vmul.f32 %v320, %v320
    %v323 = vmul.f32 %v321, %v321
    %v324 = vsub.f32 %v300, %v316
    %v325 = vsub.f32 %v305, %v317
    %v326 = vmul.f32 %v324, %v324
    %v327 = vmul.f32 %v325, %v325
    %v328 = vsub.f32 %v322, %v326
    %v329 = vsub.f32 %v323, %v327
    %332 = vrot.lane.b32.xlu0 %v328, 16
    %v333 = vpop.permute.xlu0 %332
    %334 = vrot.lane.b32.xlu0 %v329, 16
    %v335 = vpop.permute.xlu0 %334
    %v338 = vmul.f32 %v313, %v333
    %v339 = vmul.f32 %v315, %v335
    %v340 = vld [vmem:[#allocation2] sm:$0xff]
    %vm341 = vcmask 261248
    %v342 = vsel %vm341, %v338, 0.0
    %v343 = vsel %vm341, %v339, 0.0
    %v344 = vadd.f32 %v342, %v343
    %346 = vrot.lane.b32.xlu0 %v344, 112
    %v347 = vpop.permute.xlu0 %346
    %v349 = vadd.f32 %v340, %v347
    %vm350 = vcmask 130048
    %351 = vst.msk [vmem:[#allocation2] sm:$0xff] %vm350, %v349
    // Predicated region
    $region54: #{tpu_custom_call.1} parent=1 // pred_check
      %p352 = pneg %p113
    $region55: #{tpu_custom_call.1} parent=1 // pred_check_branch
      %354 = sbr.rel (%p352) target = $region57
    $region56: #{tpu_custom_call.1} parent=1 // pred_region
      %v355 = vld [vmem:[#allocation2] sm:$0xff]
      %356 = vst.msk [vmem:[#allocation12] sm:$0xff] %vm350, %v355
    $region57: #{tpu_custom_call.1} parent=1 // pred_fallthru
      _
    // Predicated region
    $region58: #{tpu_custom_call.1} parent=1 // pred_check
      _
    $region59: #{tpu_custom_call.1} parent=1 // pred_check_branch
      %358 = sbr.rel (0) target = $region61
    $region60: #{tpu_custom_call.1} parent=1 // pred_region
      %s360 = ssub.s32 128, 128
      %361 = vsyncadd [#allocation5], %s360
      %s363 = sshll.u32 [#allocation12], 4
      %s364 = int_to_ptr.vmem [resolvable:$true] %s363
      %366 = dma.vmem_to_hbm [thread:$0]  %s364, 128, %s7, [#allocation5]
    $region61: #{tpu_custom_call.1} parent=1 // pred_fallthru
      _
    // Predicated region
    $region62: #{tpu_custom_call.1} parent=1 // pred_check
      _
    $region63: #{tpu_custom_call.1} parent=1 // pred_check_branch
      %368 = sbr.rel (0) target = $region65
    $region64: #{tpu_custom_call.1} parent=1 // pred_region
      %369 = dma.done [#allocation5], 128
    $region65: #{tpu_custom_call.1} parent=1 // pred_fallthru
      _
    %370 = vsyncpa [#allocation4], 1
    %371 = vsyncpa [#allocation7], 1
    %372 = vsyncpa [#allocation10], 1
    %373 = vsyncpa [#allocation5], 1

</llo_original>
